<compile_context>
chip_gen: v6e
topology: v6e:2x2x1
jax: 0.10.0
libtpu: 0.0.40
codegen_flags: <defaults>
</compile_context>

<pallas_src>
import numpy as np
import jax
import jax.numpy as jnp
from jax.experimental import pallas as pl
from jax.experimental.pallas import tpu as pltpu


def _round_up(x: int, m: int) -> int:
    return (x + m - 1) // m * m


def _vmem_budget_bytes() -> int:
    """~half of physical VMEM (64 MiB on 128-MiB parts, 32 MiB on v7x)."""
    try:
        cap = int(pltpu.get_tpu_info().vmem_capacity_bytes)
    except Exception:
        return 32 * 1024 * 1024
    mib = max(32, min(96, cap // (2 * 1024 * 1024)))
    return mib * 1024 * 1024


def _choose_row_tile(M: int, tm_target: int) -> int:
    """Row tile: >=2 tiles when possible (v7x megacore), 16/256 aligned."""
    if M <= 16:
        return _round_up(M, 8)
    n_tiles = max(2, pl.cdiv(M, tm_target))
    tm = pl.cdiv(M, n_tiles)
    tm = _round_up(tm, 256) if tm >= 256 else _round_up(tm, 16)
    return min(tm, tm_target)


# -----------------------------------------------------------------------------
# Kernels
# -----------------------------------------------------------------------------
def _dlinear_rowmajor_kernel(x_ref, w_ref, b_ref, o_ref):
    # x_ref: [TM, L] bf16   w_ref: [L, P_pad] bf16   b_ref: [1, P_pad] f32
    # o_ref: [TM, P_pad] bf16
    acc = jnp.dot(x_ref[...], w_ref[...], preferred_element_type=jnp.float32)
    o_ref[...] = (acc + b_ref[...]).astype(o_ref.dtype)


def _dlinear_cmajor_kernel(x_ref, wt_ref, b_ref, o_ref):
    # x_ref: [1, L, TC] bf16   wt_ref: [P_pad, L] bf16   b_ref: [P_pad, 1] f32
    # o_ref: [1, P_pad, TC] bf16  (writes [B, P, C] layout directly)
    acc = jnp.dot(wt_ref[...], x_ref[0], preferred_element_type=jnp.float32)
    o_ref[0] = (acc + b_ref[...]).astype(o_ref.dtype)


# -----------------------------------------------------------------------------
# Moving-average (replicate pad) as a constant [L, L] matrix, matching
# DLinear's series_decomp: pad (k-1)//2 each side + AvgPool1d(k, stride=1).
# -----------------------------------------------------------------------------
def make_moving_avg_matrix(seq_len: int, kernel_size: int) -> np.ndarray:
    assert kernel_size % 2 == 1, "DLinear series_decomp assumes odd kernel_size"
    pad = (kernel_size - 1) // 2
    A = np.zeros((seq_len, seq_len), dtype=np.float32)
    for t in range(seq_len):
        for k in range(kernel_size):
            j = min(max(t - pad + k, 0), seq_len - 1)
            A[t, j] += 1.0 / kernel_size
    return A


# -----------------------------------------------------------------------------
# One-time parameter folding (hoisted out of the hot path).
# -----------------------------------------------------------------------------
def prepare_dlinear_params(params):
    Ws = jnp.asarray(params["w_seasonal"], jnp.float32)   # [P, L]
    bs = jnp.asarray(params["b_seasonal"], jnp.float32)   # [P]
    Wt = jnp.asarray(params["w_trend"], jnp.float32)      # [P, L]
    bt = jnp.asarray(params["b_trend"], jnp.float32)      # [P]
    A = jnp.asarray(params["avg"], jnp.float32)            # [L, L]
    P, L = Ws.shape
    P_pad = _round_up(P, 128)

    # f32 fold: out = x @ (Ws^T + A^T @ (Wt^T - Ws^T)) + (bs + bt)
    w_comb = Ws.T + A.T @ (Wt.T - Ws.T)                     # [L, P]
    b_comb = bs + bt                                        # [P]

    w_pad = (jnp.zeros((L, P_pad), jnp.float32)
             .at[:, :P].set(w_comb).astype(jnp.bfloat16))   # [L, P_pad]
    wT_pad = (jnp.zeros((P_pad, L), jnp.float32)
              .at[:P, :].set(w_comb.T).astype(jnp.bfloat16))  # [P_pad, L]
    b_row = jnp.zeros((1, P_pad), jnp.float32).at[0, :P].set(b_comb)
    b_col = jnp.zeros((P_pad, 1), jnp.float32).at[:P, 0].set(b_comb)

    return dict(w_pad=w_pad, wT_pad=wT_pad, b_row=b_row, b_col=b_col,
                seq_len=int(L), pred_len=int(P), p_pad=int(P_pad))


# -----------------------------------------------------------------------------
# Forward paths
# -----------------------------------------------------------------------------
def _forward_row_major(x, prepared, out_dtype, vmem_bytes, tm_target):
    """C < 128: flatten to [B*C, L] rows, lane-dense output over P_pad."""
    B, L, C = x.shape
    P, P_pad = prepared["pred_len"], prepared["p_pad"]
    M = B * C
    TM = _choose_row_tile(M, tm_target)
    grid = (pl.cdiv(M, TM),)

    # [B, L, C] -> [B*C, L] bf16 (one fused transpose/cast pass; no M padding).
    x2d = jnp.transpose(x, (0, 2, 1)).reshape(M, L).astype(jnp.bfloat16)

    cost = pl.CostEstimate(
        flops=2 * M * L * P_pad,
        transcendentals=0,
        bytes_accessed=int(M * L * 2 + L * P_pad * 2 + P_pad * 4
                           + M * P_pad * 2))

    out2d = pl.pallas_call(
        _dlinear_rowmajor_kernel,
        out_shape=jax.ShapeDtypeStruct((M, P_pad), out_dtype),
        grid=grid,
        in_specs=[
            pl.BlockSpec((TM, L), lambda i: (i, 0)),       # streamed row tile
            pl.BlockSpec((L, P_pad), lambda i: (0, 0)),    # resident weight
            pl.BlockSpec((1, P_pad), lambda i: (0, 0)),    # resident bias
        ],
        out_specs=pl.BlockSpec((TM, P_pad), lambda i: (i, 0)),
        compiler_params=pltpu.CompilerParams(
            dimension_semantics=("parallel",),
            vmem_limit_bytes=vmem_bytes),
        cost_estimate=cost,
    )(x2d, prepared["w_pad"], prepared["b_row"])

    out = out2d[:, :P].reshape(B, C, P)
    return jnp.transpose(out, (0, 2, 1))                    # [B, P, C]


def _forward_channel_major(x, prepared, out_dtype, vmem_bytes):
    """C >= 128: left-contract W^T @ x[b]; no input/output transpose passes."""
    B, L, C = x.shape
    P, P_pad = prepared["pred_len"], prepared["p_pad"]
    TC = 128
    grid = (B, pl.cdiv(C, TC))

    xb = x.astype(jnp.bfloat16)                             # native [B, L, C]

    cost = pl.CostEstimate(
        flops=2 * B * C * L * P_pad,
        transcendentals=0,
        bytes_accessed=int(B * L * C * 2 + P_pad * L * 2 + P_pad * 4
                           + B * P_pad * C * 2))

    out = pl.pallas_call(
        _dlinear_cmajor_kernel,
        out_shape=jax.ShapeDtypeStruct((B, P_pad, C), out_dtype),
        grid=grid,
        in_specs=[
            pl.BlockSpec((1, L, TC), lambda b, c: (b, 0, c)),   # channel tile
            pl.BlockSpec((P_pad, L), lambda b, c: (0, 0)),      # resident W^T
            pl.BlockSpec((P_pad, 1), lambda b, c: (0, 0)),      # resident bias
        ],
        out_specs=pl.BlockSpec((1, P_pad, TC), lambda b, c: (b, 0, c)),
        compiler_params=pltpu.CompilerParams(
            dimension_semantics=("parallel", "parallel"),
            vmem_limit_bytes=vmem_bytes),
        cost_estimate=cost,
    )(xb, prepared["wT_pad"], prepared["b_col"])

    return out[:, :P, :]                                    # [B, P, C]


def dlinear_forward(x, prepared, *, out_dtype=jnp.bfloat16):
    """x: [B, L, C]  ->  [B, P, C] (out_dtype, default bf16)."""
    B, L, C = x.shape
    assert L == prepared["seq_len"]
    vmem_bytes = _vmem_budget_bytes()
    tm_target = 1024 if vmem_bytes <= 32 * 1024 * 1024 else 2048
    if C >= 128:
        return _forward_channel_major(x, prepared, out_dtype, vmem_bytes)
    return _forward_row_major(x, prepared, out_dtype, vmem_bytes, tm_target)


def dlinear_reference(x, params):
    """Pure-JAX f32 reference of the same forward, for verification."""
    A = jnp.asarray(params["avg"])
    Ws, bs = jnp.asarray(params["w_seasonal"]), jnp.asarray(params["b_seasonal"])
    Wt, bt = jnp.asarray(params["w_trend"]), jnp.asarray(params["b_trend"])
    xc = jnp.transpose(x, (0, 2, 1))                         # [B, C, L]
    trend = jnp.einsum("bcl,tl->bct", xc, A)                 # [B, C, L]
    seasonal = xc - trend
    out = (jnp.einsum("bcl,pl->bcp", seasonal, Ws) + bs
           + jnp.einsum("bcl,pl->bcp", trend, Wt) + bt)      # [B, C, P]
    return jnp.transpose(out, (0, 2, 1))                     # [B, P, C]


if __name__ == "__main__":
    L = 16                 # seq_len
    P = 8                  # pred_len
    KERNEL_SIZE = 5        # moving-average window (odd, as DLinear assumes)

    key = jax.random.PRNGKey(0)
    kx, kws, kbs, kwt, kbt, kx2 = jax.random.split(key, 6)

    bound = 1.0 / np.sqrt(L)
    params = {
        "w_seasonal": jax.random.uniform(kws, (P, L), jnp.float32, -bound, bound),
        "b_seasonal": jax.random.uniform(kbs, (P,), jnp.float32, -bound, bound),
        "w_trend": jax.random.uniform(kwt, (P, L), jnp.float32, -bound, bound),
        "b_trend": jax.random.uniform(kbt, (P,), jnp.float32, -bound, bound),
        "avg": make_moving_avg_matrix(L, KERNEL_SIZE),
    }
    prepared = prepare_dlinear_params(params)   # folded once (hoisted)

    fwd = jax.jit(lambda xx: dlinear_forward(xx, prepared))

    # --- small-C path (row-major kernel) -------------------------------------
    B, C = 2, 4
    x = jax.random.normal(kx, (B, L, C), dtype=jnp.float32)
    out = jax.block_until_ready(fwd(x))
    ref = jax.block_until_ready(dlinear_reference(x, params))
    assert out.shape == (B, P, C), out.shape
    np.testing.assert_allclose(np.asarray(out.astype(jnp.float32)),
                               np.asarray(ref), rtol=5e-2, atol=5e-2)

    # --- large-C path (channel-major kernel, writes [B, P, C] directly) ------
    B2, C2 = 2, 128
    x2 = jax.random.normal(kx2, (B2, L, C2), dtype=jnp.float32)
    out2 = jax.block_until_ready(fwd(x2))
    ref2 = jax.block_until_ready(dlinear_reference(x2, params))
    assert out2.shape == (B2, P, C2), out2.shape
    np.testing.assert_allclose(np.asarray(out2.astype(jnp.float32)),
                               np.asarray(ref2), rtol=5e-2, atol=5e-2)

    print("KERNEL_OK")
</pallas_src>

<mosaic_0001>
module attributes {stable_mosaic.version = 11 : i64} {
  func.func @_dlinear_rowmajor_kernel(%arg0: i32, %arg1: memref<8x16xbf16, #tpu.memory_space<vmem>>, %arg2: memref<16x128xbf16, #tpu.memory_space<vmem>>, %arg3: memref<1x128xf32, #tpu.memory_space<vmem>>, %arg4: memref<8x128xbf16, #tpu.memory_space<vmem>>) attributes {dimension_semantics = [#tpu.dimension_semantics<parallel>], iteration_bounds = array<i64: 1>, scalar_prefetch = 0 : i64, scratch_operands = 0 : i64, tpu.core_type = #tpu.core_type<tc>, window_params = [{transform_indices = @transform_0, window_bounds = array<i64: 8, 16>}, {pipeline_mode = #tpu.pipeline_mode<synchronous>, transform_indices = @transform_1, window_bounds = array<i64: 16, 128>}, {pipeline_mode = #tpu.pipeline_mode<synchronous>, transform_indices = @transform_2, window_bounds = array<i64: 1, 128>}, {transform_indices = @transform_3, window_bounds = array<i64: 8, 128>}]} {
    %c0 = arith.constant 0 : index
    %c0_0 = arith.constant 0 : index
    %0 = vector.load %arg1[%c0, %c0_0] : memref<8x16xbf16, #tpu.memory_space<vmem>>, vector<8x16xbf16>
    %c0_1 = arith.constant 0 : index
    %c0_2 = arith.constant 0 : index
    %1 = vector.load %arg2[%c0_1, %c0_2] : memref<16x128xbf16, #tpu.memory_space<vmem>>, vector<16x128xbf16>
    %cst = arith.constant dense<0.000000e+00> : vector<8x128xf32>
    %2 = tpu.matmul %0, %1, %cst {dimension_numbers = #tpu.dot_dimension_numbers<[1], [0], [0], [1], [0, 0, 1, 1], [], []>} : vector<8x16xbf16>, vector<16x128xbf16>, vector<8x128xf32> -> vector<8x128xf32>
    %c0_3 = arith.constant 0 : index
    %c0_4 = arith.constant 0 : index
    %3 = vector.load %arg3[%c0_3, %c0_4] : memref<1x128xf32, #tpu.memory_space<vmem>>, vector<1x128xf32>
    %4 = vector.broadcast %3 : vector<1x128xf32> to vector<8x128xf32>
    %5 = arith.addf %2, %4 : vector<8x128xf32>
    %6 = arith.truncf %5 : vector<8x128xf32> to vector<8x128xbf16>
    %c0_5 = arith.constant 0 : index
    %c0_6 = arith.constant 0 : index
    %7 = vector.load %arg4[%c0_5, %c0_6] : memref<8x128xbf16, #tpu.memory_space<vmem>>, vector<8x128xbf16>
    tpu.vector_store %arg4[%c0_5, %c0_6], %6 {strides = array<i32>} : memref<8x128xbf16, #tpu.memory_space<vmem>>, vector<8x128xbf16>,
    return
  }
  func.func @transform_0(%arg0: i32) -> (i32, i32) {
    %c0_i32 = arith.constant 0 : i32
    %c0_i32_0 = arith.constant 0 : i32
    return %arg0, %c0_i32 : i32, i32
  }
  func.func @transform_1(%arg0: i32) -> (i32, i32) {
    %c0_i32 = arith.constant 0 : i32
    %c0_i32_0 = arith.constant 0 : i32
    %c0_i32_1 = arith.constant 0 : i32
    return %c0_i32, %c0_i32_0 : i32, i32
  }
  func.func @transform_2(%arg0: i32) -> (i32, i32) {
    %c0_i32 = arith.constant 0 : i32
    %c0_i32_0 = arith.constant 0 : i32
    %c0_i32_1 = arith.constant 0 : i32
    return %c0_i32, %c0_i32_0 : i32, i32
  }
  func.func @transform_3(%arg0: i32) -> (i32, i32) {
    %c0_i32 = arith.constant 0 : i32
    %c0_i32_0 = arith.constant 0 : i32
    return %arg0, %c0_i32 : i32, i32
  }
}

</mosaic_0001>

<llo_original>
// kernel: _lambda_.1
$region0: #{_lambda_.1}
  #allocation0 [shape = 'u32[]', space=smem, size = 0x4, offset = 0x4, fixed_abs, tag = 'smem constant byte address 0x4 - core index']
  #allocation1 [shape = 'u32[144,128]{1,0:T(1,128)}', space=vmem, size = 0x12000, scoped, tag = 'internal scratch']
  %s0 = inlined_call_operand.vmem [shape: bf16[8,16], index: 0, kind: input, shape index: {}]
  %s1 = inlined_call_operand.vmem [shape: bf16[16,128], index: 1, kind: input, shape index: {}]
  %s2 = inlined_call_operand.vmem [shape: f32[1,128], index: 2, kind: input, shape index: {}]
  %s3 = inlined_call_operand.hbm [shape: bf16[8,128], index: 3, kind: output, shape index: {}]
  %s4 = sld [smem:[#allocation0]]
  $region22: #{_lambda_.1} parent=0
    _
  %s6 = ssub.s32 1, %s4
  %s7 = scalar_select 0, %s6, %s4
  $region1: #{_lambda_.1} parent=0
    #allocation2 [shape = 'u8[2048]{0}', space=vmem, size = 0x800, scoped, tag = 'output window, operand 0, single buffered']
    #allocation3 [shape = 's32[1]{0}', space=sflag, size = 0x4, scoped, tag = 'scoped memory for _lambda_.1']
    %8 = vsyncpa [#allocation3], 0
    // Predicated region
    $region2: #{_lambda_.1} parent=1 // pred_check
      _
    $region3: #{_lambda_.1} parent=1 // pred_check_branch
      %10 = sbr.rel (0) target = $region5
    $region4: #{_lambda_.1} parent=1 // pred_region
      _
    $region5: #{_lambda_.1} parent=1 // pred_fallthru
      _
    // Predicated region
    $region6: #{_lambda_.1} parent=1 // pred_check
      _
    $region7: #{_lambda_.1} parent=1 // pred_check_branch
      %12 = sbr.rel (0) target = $region9
    $region8: #{_lambda_.1} parent=1 // pred_region
      _
    $region9: #{_lambda_.1} parent=1 // pred_fallthru
      _
    // Predicated region
    $region10: #{_lambda_.1} parent=1 // pred_check
      _
    $region11: #{_lambda_.1} parent=1 // pred_check_branch
      %14 = sbr.rel (0) target = $region13
    $region12: #{_lambda_.1} parent=1 // pred_region
      _
    $region13: #{_lambda_.1} parent=1 // pred_fallthru
      _
    %v16 = vld [vmem:[%s0] sm:$0xf]
    %v17 = vld [vmem:[%s1] sm:$0xf]
    %v18 = vld [vmem:[%s1 + $0x4] sm:$0xf]
    %v19 = vld [vmem:[%s2] sm:$0x1]
    %v21 = vlaneseq
    %v22 = vshrl.u32 %v21, 7
    %v23 = vsub.s32 0, %v22
    %v24 = vrot.slane %v19, %v23
    %v28 = vunpack.c.l.b16 %v17
    %v29 = vunpack.c.l.b16 %v18
    %v30 = vpack.c.b16 %v29, %v28
    %vm32 = vcmask 130048
    %v34 = vsel %vm32, %v16, 0
    %36 = vmatprep.subr.bf16.mxu0 0
    %37 = vmatpush1.bf16.msra.mxu0 0
    %38 = vmatprep.subr.bf16.mxu0 0
    %39 = vmatpush1.bf16.msra.mxu0 0
    %40 = vmatprep.subr.bf16.mxu0 0
    %41 = vmatpush1.bf16.msra.mxu0 0
    %42 = vmatprep.subr.bf16.mxu0 0
    %43 = vmatpush1.bf16.msra.mxu0 0
    %44 = vmatprep.subr.bf16.mxu0 0
    %45 = vmatpush1.bf16.msra.mxu0 0
    %46 = vmatprep.subr.bf16.mxu0 0
    %47 = vmatpush1.bf16.msra.mxu0 0
    %48 = vmatprep.subr.bf16.mxu0 0
    %49 = vmatpush1.bf16.msra.mxu0 0
    %50 = vmatprep.subr.bf16.mxu0 0
    %51 = vmatpush1.bf16.msra.mxu0 %v30
    %52 = vmatprep.subr.bf16.mxu0 0
    %53 = vmatpush2.bf16.msra.mxu0 0
    %54 = vmatprep.subr.bf16.mxu0 0
    %55 = vmatpush2.bf16.msra.mxu0 0
    %56 = vmatprep.subr.bf16.mxu0 0
    %57 = vmatpush2.bf16.msra.mxu0 0
    %58 = vmatprep.subr.bf16.mxu0 0
    %59 = vmatpush2.bf16.msra.mxu0 0
    %60 = vmatprep.subr.bf16.mxu0 0
    %61 = vmatpush2.bf16.msra.mxu0 0
    %62 = vmatprep.subr.bf16.mxu0 0
    %63 = vmatpush2.bf16.msra.mxu0 0
    %64 = vmatprep.subr.bf16.mxu0 0
    %65 = vmatpush2.bf16.msra.mxu0 0
    %66 = vmatprep.subr.bf16.mxu0 0
    %67 = vmatpush2.bf16.msra.mxu0 0
    %68 = vmatprep.mubr.bf16.mxu0 0
    %69 = vmatmul.mubr.bf16.gmra.mxu0 %v34
    %v70 = vpop.f32.mrf.mxu0
    %v71 = vadd.f32 %v24, %v70
    %v72 = vpop.f32.mrf.mxu0
    %v73 = vpop.f32.mrf.mxu0
    %v74 = vpop.f32.mrf.mxu0
    %75 = vdwg.mxu0
    %v76 = vpack.c.bf16 %v71, %v71
    %77 = vst [vmem:[#allocation2] sm:$0xf] %v76
    // Predicated region
    $region14: #{_lambda_.1} parent=1 // pred_check
      _
    $region15: #{_lambda_.1} parent=1 // pred_check_branch
      %79 = sbr.rel (0) target = $region17
    $region16: #{_lambda_.1} parent=1 // pred_region
      %s81 = ssub.s32 64, 64
      %82 = vsyncadd [#allocation3], %s81
      %s84 = sshll.u32 [#allocation2], 4
      %s85 = int_to_ptr.vmem [resolvable:$true] %s84
      %87 = dma.vmem_to_hbm [thread:$0]  %s85, 64, %s3, [#allocation3]
    $region17: #{_lambda_.1} parent=1 // pred_fallthru
      _
    // Predicated region
    $region18: #{_lambda_.1} parent=1 // pred_check
      _
    $region19: #{_lambda_.1} parent=1 // pred_check_branch
      %89 = sbr.rel (0) target = $region21
    $region20: #{_lambda_.1} parent=1 // pred_region
      %90 = dma.done [#allocation3], 64
    $region21: #{_lambda_.1} parent=1 // pred_fallthru
      _
    %91 = vsyncpa [#allocation3], 1

</llo_original>
